<compile_context>
chip_gen: v5e
topology: v5e:2x2
jax: 0.10.0
libtpu: 0.0.40
codegen_flags: <defaults>
</compile_context>

<pallas_src>
import functools

import jax
import jax.numpy as jnp
from jax.experimental import pallas as pl
from jax.experimental.pallas import tpu as pltpu


def _round_up(x, m):
    return (x + m - 1) // m * m


def _largest_tile(n_pad, target):
    """Largest multiple of 128 that divides n_pad and is <= target."""
    t = max((min(target, n_pad) // 128) * 128, 128)
    while n_pad % t != 0:
        t -= 128
    return t


def _choose_tiles(n_pad):
    """Aggregate-kernel tiles: big tk for long contiguous A DMA runs, big tm
    to amortize T re-streaming, but keep >=2 blocks on the parallel row axis
    so both v7x TensorCores get work."""
    tk = _largest_tile(n_pad, 2048)
    tm = _largest_tile(n_pad, 1024)
    if n_pad // tm < 2 and n_pad > 128:
        tm = _largest_tile(n_pad, n_pad // 2)
    return tm, tk


def _vmem_limit_bytes(working_bytes):
    # double-buffered pipeline tiles + persistent scratch, plus headroom for
    # compiler-internal scratch; stays far below v7x's 64 MiB physical VMEM.
    return int(working_bytes) + (16 << 20)


# ---------------------------------------------------------------------------
# Kernel 1: per-node linear transforms (fused neighbor + root weights).
# ---------------------------------------------------------------------------
def _node_linear_kernel(x_ref, w_ref, b_ref, t_ref, r_ref, *, hidden):
    tr = jnp.dot(x_ref[...], w_ref[...], preferred_element_type=jnp.float32)
    t_ref[...] = tr[:, :hidden].astype(t_ref.dtype)      # neighbor branch (bf16)
    r_ref[...] = tr[:, hidden:] + b_ref[...]              # root branch + bias (f32)


def node_linear(x, w_cat, b, *, tm):
    n, fin = x.shape
    two_h = w_cat.shape[1]
    h = two_h // 2
    kernel = functools.partial(_node_linear_kernel, hidden=h)
    working = 2 * (tm * fin * 2 + fin * two_h * 2 + h * 4
                   + tm * h * 2 + tm * h * 4)
    return pl.pallas_call(
        kernel,
        out_shape=(
            jax.ShapeDtypeStruct((n, h), jnp.bfloat16),    # T
            jax.ShapeDtypeStruct((n, h), jnp.float32),     # R
        ),
        grid_spec=pltpu.PrefetchScalarGridSpec(
            num_scalar_prefetch=0,
            grid=(n // tm,),
            in_specs=[
                pl.BlockSpec((tm, fin), lambda i: (i, 0)),
                pl.BlockSpec((fin, two_h), lambda i: (0, 0)),
                pl.BlockSpec((1, h), lambda i: (0, 0)),
            ],
            out_specs=(
                pl.BlockSpec((tm, h), lambda i: (i, 0)),
                pl.BlockSpec((tm, h), lambda i: (i, 0)),
            ),
        ),
        compiler_params=pltpu.CompilerParams(
            dimension_semantics=("parallel",),
            vmem_limit_bytes=_vmem_limit_bytes(working),
        ),
    )(x, w_cat, b.reshape(1, h))


# ---------------------------------------------------------------------------
# Kernel 2: tiled neighbor aggregation  out = inv_deg * (counts @ T) + R (+ReLU)
# ---------------------------------------------------------------------------
def _sage_aggregate_kernel(a_ref, t_ref, r_ref, inv_ref, o_ref, acc_ref,
                           *, apply_relu):
    k = pl.program_id(1)

    # int8 edge counts -> bf16 on the VPU (exact for small counts); the MXU
    # then runs its native bf16 path on every generation (v7x has no int MXU
    # path) while A's HBM stream is only 1 byte/element.
    prod = jnp.dot(a_ref[...].astype(jnp.bfloat16), t_ref[...],
                   preferred_element_type=jnp.float32)

    @pl.when(k == 0)
    def _():
        acc_ref[...] = prod            # no separate zeros-init pass

    @pl.when(k > 0)
    def _():
        acc_ref[...] += prod

    @pl.when(k == pl.num_programs(1) - 1)
    def _():
        out = acc_ref[...] * inv_ref[...] + r_ref[...]   # exact f32 1/deg scale
        if apply_relu:
            out = jnp.maximum(out, 0.0)
        o_ref[...] = out.astype(o_ref.dtype)


def sage_aggregate(a_counts, t, r, inv_deg, *, tm, tk, apply_relu, out_dtype):
    n = a_counts.shape[0]
    h = t.shape[1]
    kernel = functools.partial(_sage_aggregate_kernel, apply_relu=apply_relu)
    out_bytes = jnp.dtype(out_dtype).itemsize
    working = (2 * (tm * tk                # A tile (int8)
                    + tk * h * 2           # T tile (bf16)
                    + tm * h * 4           # R tile (f32)
                    + tm * 4               # inv_deg tile
                    + tm * h * out_bytes)  # out tile
               + tm * h * 4)               # f32 accumulator scratch
    return pl.pallas_call(
        kernel,
        out_shape=jax.ShapeDtypeStruct((n, h), out_dtype),
        grid_spec=pltpu.PrefetchScalarGridSpec(
            num_scalar_prefetch=0,
            grid=(n // tm, n // tk),
            in_specs=[
                pl.BlockSpec((tm, tk), lambda i, k: (i, k)),   # A counts (int8)
                pl.BlockSpec((tk, h), lambda i, k: (k, 0)),    # T tile (bf16)
                pl.BlockSpec((tm, h), lambda i, k: (i, 0)),    # R tile (f32)
                pl.BlockSpec((tm, 1), lambda i, k: (i, 0)),    # inv_deg (f32)
            ],
            out_specs=pl.BlockSpec((tm, h), lambda i, k: (i, 0)),
            scratch_shapes=[pltpu.VMEM((tm, h), jnp.float32)],
        ),
        compiler_params=pltpu.CompilerParams(
            dimension_semantics=("parallel", "arbitrary"),
            vmem_limit_bytes=_vmem_limit_bytes(working),
        ),
    )(a_counts, t, r, inv_deg)


# ---------------------------------------------------------------------------
# Host-side helpers.
# ---------------------------------------------------------------------------
def build_count_adjacency(edge_index, n_pad):
    """Dense int8 edge-count adjacency + exact f32 inverse in-degree.

    counts[i, j] = #edges j->i (duplicate edges counted with multiplicity,
    matching PyG mean aggregation on multigraphs; counts must stay <= 127).
    Padded rows/cols stay zero; padded rows get inv_deg = 1 (harmless, they
    are sliced off at the end).
    """
    src = edge_index[0]
    dst = edge_index[1]
    counts = jnp.zeros((n_pad, n_pad), jnp.int32).at[dst, src].add(1)
    deg = jnp.zeros((n_pad,), jnp.float32).at[dst].add(1.0)
    inv_deg = (1.0 / jnp.maximum(deg, 1.0)).reshape(n_pad, 1)
    # TODO(synk): build counts directly in int8 / go CSR to avoid the O(N^2)
    # int32 intermediate for large graphs.
    return counts.astype(jnp.int8), inv_deg


class GNNParams:
    """Deterministic parameter init for the 2-layer SAGE GNN."""

    def __init__(self, key, in_channels, hidden, out_channels):
        ks = jax.random.split(key, 6)

        def uniform(k, shape, fan_in):
            bound = 1.0 / jnp.sqrt(jnp.float32(fan_in))
            return jax.random.uniform(
                k, shape, jnp.float32, minval=-bound, maxval=bound
            )

        self.w_l1 = uniform(ks[0], (in_channels, hidden), in_channels)
        self.w_r1 = uniform(ks[1], (in_channels, hidden), in_channels)
        self.b1 = uniform(ks[2], (hidden,), in_channels)
        self.w_l2 = uniform(ks[3], (hidden, out_channels), hidden)
        self.w_r2 = uniform(ks[4], (hidden, out_channels), hidden)
        self.b2 = uniform(ks[5], (out_channels,), hidden)


def gnn_forward(params, x, edge_index):
    """x: [N, in_channels] f32, edge_index: [2, E] int32 -> [N, out_channels]."""
    n, fin = x.shape
    hidden = params.w_l1.shape[1]
    out_channels = params.w_l2.shape[1]

    n_pad = _round_up(n, 128)
    tm, tk = _choose_tiles(n_pad)
    tm_lin = _largest_tile(n_pad, 2048)        # linear kernel: few big row blocks
    h_out_pad = _round_up(out_channels, 128)   # lane-dense output stores

    a_counts, inv_deg = build_count_adjacency(edge_index, n_pad)

    x_pad = jnp.zeros((n_pad, fin), jnp.bfloat16).at[:n, :].set(
        x.astype(jnp.bfloat16))

    # ---- layer 1: in_channels -> hidden, ReLU (h1 emitted in bf16) ----
    w1_cat = jnp.concatenate([params.w_l1, params.w_r1], axis=1).astype(
        jnp.bfloat16)
    t1, r1 = node_linear(x_pad, w1_cat, params.b1, tm=tm_lin)
    h1 = sage_aggregate(a_counts, t1, r1, inv_deg, tm=tm, tk=tk,
                        apply_relu=True, out_dtype=jnp.bfloat16)

    # ---- layer 2: hidden -> out_channels (padded to 128 lanes) ----
    w_l2 = jnp.zeros((hidden, h_out_pad), jnp.float32).at[:, :out_channels].set(
        params.w_l2)
    w_r2 = jnp.zeros((hidden, h_out_pad), jnp.float32).at[:, :out_channels].set(
        params.w_r2)
    b2 = jnp.zeros((h_out_pad,), jnp.float32).at[:out_channels].set(params.b2)
    w2_cat = jnp.concatenate([w_l2, w_r2], axis=1).astype(jnp.bfloat16)
    t2, r2 = node_linear(h1, w2_cat, b2, tm=tm_lin)
    y = sage_aggregate(a_counts, t2, r2, inv_deg, tm=tm, tk=tk,
                       apply_relu=False, out_dtype=jnp.float32)

    return y[:n, :out_channels]


def _reference_forward(params, x, edge_index, n):
    """Pure-JAX f32 reference for a sanity check."""
    src, dst = edge_index[0], edge_index[1]
    a = jnp.zeros((n, n), jnp.float32).at[dst, src].add(1.0)
    a = a / jnp.maximum(jnp.sum(a, axis=1, keepdims=True), 1.0)
    h = jnp.maximum(a @ x @ params.w_l1 + x @ params.w_r1 + params.b1, 0.0)
    return a @ h @ params.w_l2 + h @ params.w_r2 + params.b2


if __name__ == "__main__":
    key = jax.random.PRNGKey(0)
    k_x, k_e, k_p = jax.random.split(key, 3)

    num_nodes = 64
    in_channels = 16
    hidden = 128
    out_channels = 8
    num_edges = 256

    x = jax.random.normal(k_x, (num_nodes, in_channels), jnp.float32)
    edge_index = jax.random.randint(
        k_e, (2, num_edges), minval=0, maxval=num_nodes, dtype=jnp.int32
    )

    params = GNNParams(k_p, in_channels, hidden, out_channels)

    out = gnn_forward(params, x, edge_index)
    out = jax.block_until_ready(out)

    assert out.shape == (num_nodes, out_channels)
    assert bool(jnp.all(jnp.isfinite(out)))

    ref = _reference_forward(params, x, edge_index, num_nodes)
    assert bool(
        jnp.allclose(out, ref, atol=1e-1, rtol=1e-1)
    ), "mismatch vs reference"

    print("KERNEL_OK")
</pallas_src>

<mosaic_0001>
module attributes {stable_mosaic.version = 11 : i64} {
  func.func @_node_linear_kernel(%arg0: i32, %arg1: memref<128x16xbf16, #tpu.memory_space<vmem>>, %arg2: memref<16x256xbf16, #tpu.memory_space<vmem>>, %arg3: memref<1x128xf32, #tpu.memory_space<vmem>>, %arg4: memref<128x128xbf16, #tpu.memory_space<vmem>>, %arg5: memref<128x128xf32, #tpu.memory_space<vmem>>) attributes {dimension_semantics = [#tpu.dimension_semantics<parallel>], iteration_bounds = array<i64: 1>, scalar_prefetch = 0 : i64, scratch_operands = 0 : i64, tpu.core_type = #tpu.core_type<tc>, window_params = [{transform_indices = @transform_0, window_bounds = array<i64: 128, 16>}, {pipeline_mode = #tpu.pipeline_mode<synchronous>, transform_indices = @transform_1, window_bounds = array<i64: 16, 256>}, {pipeline_mode = #tpu.pipeline_mode<synchronous>, transform_indices = @transform_2, window_bounds = array<i64: 1, 128>}, {transform_indices = @transform_3, window_bounds = array<i64: 128, 128>}, {transform_indices = @transform_4, window_bounds = array<i64: 128, 128>}]} {
    %c0 = arith.constant 0 : index
    %c0_0 = arith.constant 0 : index
    %0 = vector.load %arg1[%c0, %c0_0] : memref<128x16xbf16, #tpu.memory_space<vmem>>, vector<128x16xbf16>
    %c0_1 = arith.constant 0 : index
    %c0_2 = arith.constant 0 : index
    %1 = vector.load %arg2[%c0_1, %c0_2] : memref<16x256xbf16, #tpu.memory_space<vmem>>, vector<16x256xbf16>
    %cst = arith.constant dense<0.000000e+00> : vector<128x256xf32>
    %2 = tpu.matmul %0, %1, %cst {dimension_numbers = #tpu.dot_dimension_numbers<[1], [0], [0], [1], [0, 0, 1, 1], [], []>} : vector<128x16xbf16>, vector<16x256xbf16>, vector<128x256xf32> -> vector<128x256xf32>
    %3 = vector.extract_strided_slice %2 {offsets = [0, 0], sizes = [128, 128], strides = [1, 1]} : vector<128x256xf32> to vector<128x128xf32>
    %4 = arith.truncf %3 : vector<128x128xf32> to vector<128x128xbf16>
    %c0_3 = arith.constant 0 : index
    %c0_4 = arith.constant 0 : index
    %5 = vector.load %arg4[%c0_3, %c0_4] : memref<128x128xbf16, #tpu.memory_space<vmem>>, vector<128x128xbf16>
    tpu.vector_store %arg4[%c0_3, %c0_4], %4 {strides = array<i32>} : memref<128x128xbf16, #tpu.memory_space<vmem>>, vector<128x128xbf16>,
    %6 = vector.extract_strided_slice %2 {offsets = [0, 128], sizes = [128, 128], strides = [1, 1]} : vector<128x256xf32> to vector<128x128xf32>
    %c0_5 = arith.constant 0 : index
    %c0_6 = arith.constant 0 : index
    %7 = vector.load %arg3[%c0_5, %c0_6] : memref<1x128xf32, #tpu.memory_space<vmem>>, vector<1x128xf32>
    %8 = vector.broadcast %7 : vector<1x128xf32> to vector<128x128xf32>
    %9 = arith.addf %6, %8 : vector<128x128xf32>
    %c0_7 = arith.constant 0 : index
    %c0_8 = arith.constant 0 : index
    %10 = vector.load %arg5[%c0_7, %c0_8] : memref<128x128xf32, #tpu.memory_space<vmem>>, vector<128x128xf32>
    tpu.vector_store %arg5[%c0_7, %c0_8], %9 {strides = array<i32>} : memref<128x128xf32, #tpu.memory_space<vmem>>, vector<128x128xf32>,
    return
  }
  func.func @transform_0(%arg0: i32) -> (i32, i32) {
    %c0_i32 = arith.constant 0 : i32
    %c0_i32_0 = arith.constant 0 : i32
    return %arg0, %c0_i32 : i32, i32
  }
  func.func @transform_1(%arg0: i32) -> (i32, i32) {
    %c0_i32 = arith.constant 0 : i32
    %c0_i32_0 = arith.constant 0 : i32
    %c0_i32_1 = arith.constant 0 : i32
    return %c0_i32, %c0_i32_0 : i32, i32
  }
  func.func @transform_2(%arg0: i32) -> (i32, i32) {
    %c0_i32 = arith.constant 0 : i32
    %c0_i32_0 = arith.constant 0 : i32
    %c0_i32_1 = arith.constant 0 : i32
    return %c0_i32, %c0_i32_0 : i32, i32
  }
  func.func @transform_3(%arg0: i32) -> (i32, i32) {
    %c0_i32 = arith.constant 0 : i32
    %c0_i32_0 = arith.constant 0 : i32
    return %arg0, %c0_i32 : i32, i32
  }
  func.func @transform_4(%arg0: i32) -> (i32, i32) {
    %c0_i32 = arith.constant 0 : i32
    %c0_i32_0 = arith.constant 0 : i32
    return %arg0, %c0_i32 : i32, i32
  }
}

</mosaic_0001>

<llo_original>
// kernel: tpu_custom_call.1
$region0: #{tpu_custom_call.1}
  #allocation0 [shape = 'u32[]', space=smem, size = 0x4, offset = 0x4, fixed_abs, tag = 'smem constant byte address 0x4 - core index']
  #allocation1 [shape = 'u32[72,128]{1,0:T(1,128)}', space=vmem, size = 0x9000, scoped, tag = 'internal scratch']
  %s0 = inlined_call_operand.vmem [shape: bf16[128,16], index: 0, kind: input, shape index: {}]
  %s1 = inlined_call_operand.vmem [shape: bf16[16,256], index: 1, kind: input, shape index: {}]
  %s2 = inlined_call_operand.vmem [shape: f32[1,128], index: 2, kind: input, shape index: {}]
  %s3 = inlined_call_operand.hbm [shape: bf16[128,128], index: 3, kind: output, shape index: {0}]
  %s4 = inlined_call_operand.hbm [shape: f32[128,128], index: 4, kind: output, shape index: {1}]
  %5 = xla_tuple %s3, %s4
  %s6 = sld [smem:[#allocation0]]
  $region30: #{tpu_custom_call.1} parent=0
    _
  %s8 = ssub.s32 1, %s6
  %s9 = scalar_select 0, %s8, %s6
  $region1: #{tpu_custom_call.1} parent=0
    #allocation2 [shape = 'u8[32768]{0}', space=vmem, size = 0x8000, scoped, tag = 'output window, operand 0, single buffered']
    #allocation3 [shape = 's32[1]{0}', space=sflag, size = 0x4, scoped, tag = 'scoped memory for tpu_custom_call.1']
    #allocation4 [shape = 'u8[65536]{0}', space=vmem, size = 0x10000, scoped, tag = 'output window, operand 1, single buffered']
    #allocation5 [shape = 's32[1]{0}', space=sflag, size = 0x4, scoped, tag = 'scoped memory for tpu_custom_call.1']
    %10 = vsyncpa [#allocation3], 0
    %11 = vsyncpa [#allocation5], 0
    // Predicated region
    $region2: #{tpu_custom_call.1} parent=1 // pred_check
      _
    $region3: #{tpu_custom_call.1} parent=1 // pred_check_branch
      %13 = sbr.rel (0) target = $region5
    $region4: #{tpu_custom_call.1} parent=1 // pred_region
      _
    $region5: #{tpu_custom_call.1} parent=1 // pred_fallthru
      _
    // Predicated region
    $region6: #{tpu_custom_call.1} parent=1 // pred_check
      _
    $region7: #{tpu_custom_call.1} parent=1 // pred_check_branch
      %15 = sbr.rel (0) target = $region9
    $region8: #{tpu_custom_call.1} parent=1 // pred_region
      _
    $region9: #{tpu_custom_call.1} parent=1 // pred_fallthru
      _
    // Predicated region
    $region10: #{tpu_custom_call.1} parent=1 // pred_check
      _
    $region11: #{tpu_custom_call.1} parent=1 // pred_check_branch
      %17 = sbr.rel (0) target = $region13
    $region12: #{tpu_custom_call.1} parent=1 // pred_region
      _
    $region13: #{tpu_custom_call.1} parent=1 // pred_fallthru
      _
    %v19 = vld [vmem:[%s0] sm:$0xf]
    %v20 = vld [vmem:[%s0 + $0x4] sm:$0xf]
    %v21 = vld [vmem:[%s0 + $0x8] sm:$0xf]
    %v22 = vld [vmem:[%s0 + $0xc] sm:$0xf]
    %v23 = vld [vmem:[%s0 + $0x10] sm:$0xf]
    %v24 = vld [vmem:[%s0 + $0x14] sm:$0xf]
    %v25 = vld [vmem:[%s0 + $0x18] sm:$0xf]
    %v26 = vld [vmem:[%s0 + $0x1c] sm:$0xf]
    %v27 = vld [vmem:[%s0 + $0x20] sm:$0xf]
    %v28 = vld [vmem:[%s0 + $0x24] sm:$0xf]
    %v29 = vld [vmem:[%s0 + $0x28] sm:$0xf]
    %v30 = vld [vmem:[%s0 + $0x2c] sm:$0xf]
    %v31 = vld [vmem:[%s0 + $0x30] sm:$0xf]
    %v32 = vld [vmem:[%s0 + $0x34] sm:$0xf]
    %v33 = vld [vmem:[%s0 + $0x38] sm:$0xf]
    %v34 = vld [vmem:[%s0 + $0x3c] sm:$0xf]
    %v35 = vld [vmem:[%s1] sm:$0xff]
    %v36 = vld [vmem:[%s1 + $0x8] sm:$0xff]
    %v53 = vunpack.c.l.b16 %v19
    %v54 = vunpack.c.l.b16 %v20
    %v55 = vunpack.c.l.b16 %v21
    %v56 = vunpack.c.l.b16 %v22
    %v57 = vunpack.c.l.b16 %v23
    %v58 = vunpack.c.l.b16 %v24
    %v59 = vunpack.c.l.b16 %v25
    %v60 = vunpack.c.l.b16 %v26
    %v61 = vunpack.c.l.b16 %v27
    %v62 = vunpack.c.l.b16 %v28
    %v63 = vunpack.c.l.b16 %v29
    %v64 = vunpack.c.l.b16 %v30
    %v65 = vunpack.c.l.b16 %v31
    %v66 = vunpack.c.l.b16 %v32
    %v67 = vunpack.c.l.b16 %v33
    %v68 = vunpack.c.l.b16 %v34
    %v69 = vpack.c.b16 %v54, %v53
    %v70 = vpack.c.b16 %v56, %v55
    %v71 = vpack.c.b16 %v58, %v57
    %v72 = vpack.c.b16 %v60, %v59
    %v73 = vpack.c.b16 %v62, %v61
    %v74 = vpack.c.b16 %v64, %v63
    %v75 = vpack.c.b16 %v66, %v65
    %v76 = vpack.c.b16 %v68, %v67
    %v79 = vunpack.c.l.b16 %v35
    %v80 = vunpack.c.h.b16 %v35
    %v81 = vunpack.c.l.b16 %v36
    %v82 = vunpack.c.h.b16 %v36
    %v83 = vpack.c.b16 %v81, %v79
    %v84 = vpack.c.b16 %v82, %v80
    %vm87 = vcmask 130048
    %v89 = vsel %vm87, %v69, 0
    %v92 = vsel %vm87, %v70, 0
    %v95 = vsel %vm87, %v71, 0
    %v98 = vsel %vm87, %v72, 0
    %v101 = vsel %vm87, %v73, 0
    %v104 = vsel %vm87, %v74, 0
    %v107 = vsel %vm87, %v75, 0
    %v110 = vsel %vm87, %v76, 0
    %112 = vmatpush.bf16.msra.mxu0 0
    %113 = vmatpush.bf16.msra.mxu0 0
    %114 = vmatpush.bf16.msra.mxu0 0
    %115 = vmatpush.bf16.msra.mxu0 0
    %116 = vmatpush.bf16.msra.mxu0 0
    %117 = vmatpush.bf16.msra.mxu0 0
    %118 = vmatpush.bf16.msra.mxu0 0
    %119 = vmatpush.bf16.msra.mxu0 %v83
    %120 = vmatmul.bf16.gmra.mxu0 %v89
    %v121 = vpop.f32.mrf.mxu0
    %v122 = vadd.f32 0.0, %v121
    %v123 = vpop.f32.mrf.mxu0
    %v124 = vadd.f32 0.0, %v123
    %125 = vmatmul.bf16.gmra.mxu0 %v92
    %v126 = vpop.f32.mrf.mxu0
    %v127 = vadd.f32 0.0, %v126
    %v128 = vpop.f32.mrf.mxu0
    %v129 = vadd.f32 0.0, %v128
    %130 = vmatmul.bf16.gmra.mxu0 %v95
    %v131 = vpop.f32.mrf.mxu0
    %v132 = vadd.f32 0.0, %v131
    %v133 = vpop.f32.mrf.mxu0
    %v134 = vadd.f32 0.0, %v133
    %135 = vmatmul.bf16.gmra.mxu0 %v98
    %v136 = vpop.f32.mrf.mxu0
    %v137 = vadd.f32 0.0, %v136
    %v138 = vpop.f32.mrf.mxu0
    %v139 = vadd.f32 0.0, %v138
    %140 = vmatmul.bf16.gmra.mxu0 %v101
    %v141 = vpop.f32.mrf.mxu0
    %v142 = vadd.f32 0.0, %v141
    %v143 = vpop.f32.mrf.mxu0
    %v144 = vadd.f32 0.0, %v143
    %145 = vmatmul.bf16.gmra.mxu0 %v104
    %v146 = vpop.f32.mrf.mxu0
    %v147 = vadd.f32 0.0, %v146
    %v148 = vpop.f32.mrf.mxu0
    %v149 = vadd.f32 0.0, %v148
    %150 = vmatmul.bf16.gmra.mxu0 %v107
    %v151 = vpop.f32.mrf.mxu0
    %v152 = vadd.f32 0.0, %v151
    %v153 = vpop.f32.mrf.mxu0
    %v154 = vadd.f32 0.0, %v153
    %155 = vmatmul.bf16.gmra.mxu0 %v110
    %v156 = vpop.f32.mrf.mxu0
    %v157 = vadd.f32 0.0, %v156
    %v158 = vpop.f32.mrf.mxu0
    %v159 = vadd.f32 0.0, %v158
    %160 = vdwg.mxu0
    %161 = vmatpush.bf16.msra.mxu0 0
    %162 = vmatpush.bf16.msra.mxu0 0
    %163 = vmatpush.bf16.msra.mxu0 0
    %164 = vmatpush.bf16.msra.mxu0 0
    %165 = vmatpush.bf16.msra.mxu0 0
    %166 = vmatpush.bf16.msra.mxu0 0
    %167 = vmatpush.bf16.msra.mxu0 0
    %168 = vmatpush.bf16.msra.mxu0 %v84
    %169 = vmatmul.bf16.gmra.mxu0 %v89
    %v170 = vpop.f32.mrf.mxu0
    %v171 = vadd.f32 0.0, %v170
    %v172 = vpop.f32.mrf.mxu0
    %v173 = vadd.f32 0.0, %v172
    %174 = vmatmul.bf16.gmra.mxu0 %v92
    %v175 = vpop.f32.mrf.mxu0
    %v176 = vadd.f32 0.0, %v175
    %v177 = vpop.f32.mrf.mxu0
    %v178 = vadd.f32 0.0, %v177
    %179 = vmatmul.bf16.gmra.mxu0 %v95
    %v180 = vpop.f32.mrf.mxu0
    %v181 = vadd.f32 0.0, %v180
    %v182 = vpop.f32.mrf.mxu0
    %v183 = vadd.f32 0.0, %v182
    %184 = vmatmul.bf16.gmra.mxu0 %v98
    %v185 = vpop.f32.mrf.mxu0
    %v186 = vadd.f32 0.0, %v185
    %v187 = vpop.f32.mrf.mxu0
    %v188 = vadd.f32 0.0, %v187
    %189 = vmatmul.bf16.gmra.mxu0 %v101
    %v190 = vpop.f32.mrf.mxu0
    %v191 = vadd.f32 0.0, %v190
    %v192 = vpop.f32.mrf.mxu0
    %v193 = vadd.f32 0.0, %v192
    %194 = vmatmul.bf16.gmra.mxu0 %v104
    %v195 = vpop.f32.mrf.mxu0
    %v196 = vadd.f32 0.0, %v195
    %v197 = vpop.f32.mrf.mxu0
    %v198 = vadd.f32 0.0, %v197
    %199 = vmatmul.bf16.gmra.mxu0 %v107
    %v200 = vpop.f32.mrf.mxu0
    %v201 = vadd.f32 0.0, %v200
    %v202 = vpop.f32.mrf.mxu0
    %v203 = vadd.f32 0.0, %v202
    %204 = vmatmul.bf16.gmra.mxu0 %v110
    %v205 = vpop.f32.mrf.mxu0
    %v206 = vadd.f32 0.0, %v205
    %v207 = vpop.f32.mrf.mxu0
    %v208 = vadd.f32 0.0, %v207
    %209 = vdwg.mxu0
    %v210 = vpack.c.bf16 %v122, %v122
    %v211 = vpack.c.bf16 %v124, %v124
    %v212 = vpack.c.bf16 %v127, %v127
    %v213 = vpack.c.bf16 %v129, %v129
    %v214 = vpack.c.bf16 %v132, %v132
    %v215 = vpack.c.bf16 %v134, %v134
    %v216 = vpack.c.bf16 %v137, %v137
    %v217 = vpack.c.bf16 %v139, %v139
    %v218 = vpack.c.bf16 %v142, %v142
    %v219 = vpack.c.bf16 %v144, %v144
    %v220 = vpack.c.bf16 %v147, %v147
    %v221 = vpack.c.bf16 %v149, %v149
    %v222 = vpack.c.bf16 %v152, %v152
    %v223 = vpack.c.bf16 %v154, %v154
    %v224 = vpack.c.bf16 %v157, %v157
    %v225 = vpack.c.bf16 %v159, %v159
    %226 = vst [vmem:[#allocation2] sm:$0xf] %v210
    %227 = vst [vmem:[#allocation2 + $0x4] sm:$0xf] %v211
    %228 = vst [vmem:[#allocation2 + $0x8] sm:$0xf] %v212
    %229 = vst [vmem:[#allocation2 + $0xc] sm:$0xf] %v213
    %230 = vst [vmem:[#allocation2 + $0x10] sm:$0xf] %v214
    %231 = vst [vmem:[#allocation2 + $0x14] sm:$0xf] %v215
    %232 = vst [vmem:[#allocation2 + $0x18] sm:$0xf] %v216
    %233 = vst [vmem:[#allocation2 + $0x1c] sm:$0xf] %v217
    %234 = vst [vmem:[#allocation2 + $0x20] sm:$0xf] %v218
    %235 = vst [vmem:[#allocation2 + $0x24] sm:$0xf] %v219
    %236 = vst [vmem:[#allocation2 + $0x28] sm:$0xf] %v220
    %237 = vst [vmem:[#allocation2 + $0x2c] sm:$0xf] %v221
    %238 = vst [vmem:[#allocation2 + $0x30] sm:$0xf] %v222
    %239 = vst [vmem:[#allocation2 + $0x34] sm:$0xf] %v223
    %240 = vst [vmem:[#allocation2 + $0x38] sm:$0xf] %v224
    %241 = vst [vmem:[#allocation2 + $0x3c] sm:$0xf] %v225
    %v242 = vld [vmem:[%s2] sm:$0x1]
    %v244 = vperm.slane %v242, 0
    %v246 = vadd.f32 %v171, %v244
    %v247 = vadd.f32 %v173, %v244
    %v248 = vadd.f32 %v176, %v244
    %v249 = vadd.f32 %v178, %v244
    %v250 = vadd.f32 %v181, %v244
    %v251 = vadd.f32 %v183, %v244
    %v252 = vadd.f32 %v186, %v244
    %v253 = vadd.f32 %v188, %v244
    %v254 = vadd.f32 %v191, %v244
    %v255 = vadd.f32 %v193, %v244
    %v256 = vadd.f32 %v196, %v244
    %v257 = vadd.f32 %v198, %v244
    %v258 = vadd.f32 %v201, %v244
    %v259 = vadd.f32 %v203, %v244
    %v260 = vadd.f32 %v206, %v244
    %v261 = vadd.f32 %v208, %v244
    %262 = vst [vmem:[#allocation4] sm:$0xff] %v246
    %263 = vst [vmem:[#allocation4 + $0x8] sm:$0xff] %v247
    %264 = vst [vmem:[#allocation4 + $0x10] sm:$0xff] %v248
    %265 = vst [vmem:[#allocation4 + $0x18] sm:$0xff] %v249
    %266 = vst [vmem:[#allocation4 + $0x20] sm:$0xff] %v250
    %267 = vst [vmem:[#allocation4 + $0x28] sm:$0xff] %v251
    %268 = vst [vmem:[#allocation4 + $0x30] sm:$0xff] %v252
    %269 = vst [vmem:[#allocation4 + $0x38] sm:$0xff] %v253
    %270 = vst [vmem:[#allocation4 + $0x40] sm:$0xff] %v254
    %271 = vst [vmem:[#allocation4 + $0x48] sm:$0xff] %v255
    %272 = vst [vmem:[#allocation4 + $0x50] sm:$0xff] %v256
    %273 = vst [vmem:[#allocation4 + $0x58] sm:$0xff] %v257
    %274 = vst [vmem:[#allocation4 + $0x60] sm:$0xff] %v258
    %275 = vst [vmem:[#allocation4 + $0x68] sm:$0xff] %v259
    %276 = vst [vmem:[#allocation4 + $0x70] sm:$0xff] %v260
    %277 = vst [vmem:[#allocation4 + $0x78] sm:$0xff] %v261
    // Predicated region
    $region14: #{tpu_custom_call.1} parent=1 // pred_check
      _
    $region15: #{tpu_custom_call.1} parent=1 // pred_check_branch
      %279 = sbr.rel (0) target = $region17
    $region16: #{tpu_custom_call.1} parent=1 // pred_region
      %281 = vsyncadd [#allocation3], 0
      %s282 = sshll.u32 [#allocation2], 4
      %s283 = int_to_ptr.vmem [resolvable:$true] %s282
      %s284 = sshll.u32 %s3, 4
      %s285 = int_to_ptr.hbm [resolvable:$true] %s284
      %290 = dma.vmem_to_hbm [thread:$0]  %s283, 1024, %s285, [#allocation3], 64, 64, 4
    $region17: #{tpu_custom_call.1} parent=1 // pred_fallthru
      _
    // Predicated region
    $region18: #{tpu_custom_call.1} parent=1 // pred_check
      _
    $region19: #{tpu_custom_call.1} parent=1 // pred_check_branch
      %292 = sbr.rel (0) target = $region21
    $region20: #{tpu_custom_call.1} parent=1 // pred_region
      %294 = vsyncadd [#allocation5], 0
      %s295 = sshll.u32 [#allocation4], 4
      %s296 = int_to_ptr.vmem [resolvable:$true] %s295
      %s297 = sshll.u32 %s4, 4
      %s298 = int_to_ptr.hbm [resolvable:$true] %s297
      %303 = dma.vmem_to_hbm [thread:$0]  %s296, 2048, %s298, [#allocation5], 128, 128, 8
    $region21: #{tpu_custom_call.1} parent=1 // pred_fallthru
      _
    // Predicated region
    $region22: #{tpu_custom_call.1} parent=1 // pred_check
      _
    $region23: #{tpu_custom_call.1} parent=1 // pred_check_branch
      %305 = sbr.rel (0) target = $region25
    $region24: #{tpu_custom_call.1} parent=1 // pred_region
      %307 = dma.done [#allocation3], 1024
    $region25: #{tpu_custom_call.1} parent=1 // pred_fallthru
      _
    // Predicated region
    $region26: #{tpu_custom_call.1} parent=1 // pred_check
      _
    $region27: #{tpu_custom_call.1} parent=1 // pred_check_branch
      %309 = sbr.rel (0) target = $region29
    $region28: #{tpu_custom_call.1} parent=1 // pred_region
      %311 = dma.done [#allocation5], 2048
    $region29: #{tpu_custom_call.1} parent=1 // pred_fallthru
      _
    %312 = vsyncpa [#allocation3], 1
    %313 = vsyncpa [#allocation5], 1

</llo_original>
